<compile_context>
chip_gen: v7x
topology: tpu7x:2x2x1
jax: 0.10.0
libtpu: 0.0.40
codegen_flags: <defaults>
</compile_context>

<pallas_src>
import functools

import jax
import jax.numpy as jnp
from jax.experimental import pallas as pl
from jax.experimental.pallas import tpu as pltpu

_LANE = 128
_SUBLANE = 8


def _round_up(x, m):
    return -(-x // m) * m


def _dropout_kernel(seed_ref, x_ref, o_ref, *, width_log2, threshold, scale):
    """Elementwise dropout on one (tile_rows, width) VMEM tile."""
    pid = pl.program_id(0)

    # Per-tile scalar key (scalar unit -> free slot): seed and tile id mixed so
    # masks never repeat across tiles / TensorCores and differ per seed.
    seed_u = seed_ref[0].astype(jnp.uint32)
    pid_u = pid.astype(jnp.uint32)
    key = seed_u * jnp.uint32(0x9E3779B1) + pid_u * jnp.uint32(0x85EBCA77)

    shape = x_ref.shape  # (tile_rows, width)
    row = jax.lax.broadcasted_iota(jnp.int32, shape, 0)
    col = jax.lax.broadcasted_iota(jnp.int32, shape, 1)
    # width is a power of two -> local element index via shift|or (no vmul).
    # Index is local to the tile (tile id lives in `key`), so no 2^32 wrap
    # concern even for huge tensors.
    idx = ((row << width_log2) | col).astype(jnp.uint32)

    # Cheap counter-based mixer: 2 xorshifts + 1 multiply + 1 fold.
    h = idx ^ key
    h = h ^ (h << 13)
    h = h ^ (h >> 17)
    h = h * jnp.uint32(0x9E3779B1)
    h = h ^ (h >> 16)

    # keep iff top-24 random bits >= p * 2^24   (probability 1-p, +/- 2^-24).
    r24 = (h >> 8).astype(jnp.int32)
    keep = r24 >= jnp.int32(threshold)

    # Scale in f32 for unbiasedness on low-precision dtypes; single output cast.
    x = x_ref[...].astype(jnp.float32)
    y = jnp.where(keep, x * jnp.float32(scale), jnp.float32(0.0))
    o_ref[...] = y.astype(o_ref.dtype)


def mc_dropout(x, *, p=0.5, force_dropout=False, training=False, seed=0):
    """Monte-Carlo dropout matching torch.nn.functional.dropout semantics."""
    active = bool(training) or bool(force_dropout)
    if (not active) or p == 0.0:
        return x
    if p >= 1.0:
        return jnp.zeros_like(x)

    orig_shape = x.shape
    orig_dtype = x.dtype
    n = x.size

    # ---- Lay the tensor out as a lane-dense 2D slab (rows, width). ----------
    width = None
    # Pass 1: zero-copy and no partial blocks (rows % 8 == 0).
    for w in (1024, 512, 256, 128):
        if n % w == 0 and (n // w) % _SUBLANE == 0:
            width = w
            break
    # Pass 2: still zero-copy; the trailing row block is partial (Pallas pads
    # the read and masks the write), which is far cheaper than pad + slice.
    if width is None:
        for w in (1024, 512, 256, 128):
            if n % w == 0:
                width = w
                break
    if width is not None:
        rows = n // width
        x2d = jnp.reshape(x, (rows, width))
        pad = 0
    else:
        # TODO(synk): handle the ragged tail with manual DMA / masked stores to
        # avoid this pad + post-slice HBM round trip.
        width = _LANE
        rows = pl.cdiv(n, width)
        pad = rows * width - n
        x2d = jnp.reshape(jnp.pad(jnp.reshape(x, (-1,)), (0, pad)), (rows, width))

    # ---- Tile the row axis: ~2 MiB per buffer, even tile count for v7x. -----
    itemsize = jnp.dtype(orig_dtype).itemsize
    bytes_per_row = width * itemsize
    total_bytes = rows * bytes_per_row
    target_tile_bytes = 2 << 20  # 2 MiB/buffer; 4x double-buffered = 8 MiB < v5e 16 MiB scoped default
    num_tiles = max(1, pl.cdiv(total_bytes, target_tile_bytes))
    if rows > _SUBLANE:
        num_tiles = max(2, num_tiles)      # keep both v7x TensorCores busy
        if num_tiles % 2:
            num_tiles += 1                 # even split across the 2 TCs
    tile_rows = _round_up(pl.cdiv(rows, num_tiles), _SUBLANE)
    tile_rows = max(_SUBLANE, min(tile_rows, _round_up(rows, _SUBLANE)))
    grid = (pl.cdiv(rows, tile_rows),)

    threshold = min(int(round(p * (1 << 24))), (1 << 24) - 1)
    scale = 1.0 / (1.0 - p)
    seed_arr = jnp.asarray(seed, dtype=jnp.int32).reshape((1,))
    width_log2 = width.bit_length() - 1

    # TODO(synk): for sub-32-bit dtypes, derive two 16-bit keep decisions per
    # 32-bit hash to halve the per-element integer work (bf16 on v7x).

    kernel = functools.partial(
        _dropout_kernel,
        width_log2=width_log2,
        threshold=threshold,
        scale=scale,
    )

    out2d = pl.pallas_call(
        kernel,
        out_shape=jax.ShapeDtypeStruct((rows, width), orig_dtype),
        grid=grid,
        in_specs=[
            pl.BlockSpec(memory_space=pltpu.SMEM),               # seed scalar
            pl.BlockSpec((tile_rows, width), lambda i: (i, 0)),  # x tile
        ],
        out_specs=pl.BlockSpec((tile_rows, width), lambda i: (i, 0)),
        compiler_params=pltpu.CompilerParams(
            dimension_semantics=("parallel",),
            vmem_limit_bytes=32 << 20,
        ),
    )(seed_arr, x2d)

    if pad:
        out = jnp.reshape(out2d, (-1,))[:n]
    else:
        out = out2d
    return jnp.reshape(out, orig_shape)


if __name__ == "__main__":
    key = jax.random.PRNGKey(0)
    x = jax.random.normal(key, (2, 4, 16, 16), dtype=jnp.float32)

    p = 0.5
    scale = 1.0 / (1.0 - p)

    # force_dropout=True -> dropout active even in eval (MC-dropout behaviour).
    y = mc_dropout(x, p=p, force_dropout=True, training=False, seed=1234)
    y = jax.block_until_ready(y)

    # Sanity checks: shape/dtype preserved; surviving elements scaled by
    # 1/(1-p); dropped elements exactly zero; keep-rate roughly (1-p).
    assert y.shape == x.shape and y.dtype == x.dtype
    kept = y != 0.0
    assert jnp.allclose(
        jnp.where(kept, y, 0.0),
        jnp.where(kept, x * scale, 0.0),
        rtol=1e-6, atol=1e-6,
    )
    keep_rate = float(jnp.mean(kept.astype(jnp.float32)))
    assert 0.3 < keep_rate < 0.7, keep_rate

    # Different seeds give different masks (Monte-Carlo property).
    y2 = jax.block_until_ready(
        mc_dropout(x, p=p, force_dropout=True, training=False, seed=4321))
    assert not jnp.array_equal(y, y2)

    # Inactive path (training=False, force_dropout=False) is identity.
    y_id = jax.block_until_ready(
        mc_dropout(x, p=p, force_dropout=False, training=False))
    assert jnp.array_equal(y_id, x)

    # Exercise the relaxed zero-copy path with a partial trailing row block.
    xb = jax.random.normal(jax.random.PRNGKey(1), (2, 4, 16, 18), dtype=jnp.float32)
    yb = jax.block_until_ready(
        mc_dropout(xb, p=p, force_dropout=True, training=False, seed=7))
    keptb = yb != 0.0
    assert yb.shape == xb.shape and yb.dtype == xb.dtype
    assert jnp.allclose(
        jnp.where(keptb, yb, 0.0),
        jnp.where(keptb, xb * scale, 0.0),
        rtol=1e-6, atol=1e-6,
    )

    print("KERNEL_OK")
</pallas_src>

<mosaic_0001>
module attributes {stable_mosaic.version = 11 : i64} {
  func.func @_dropout_kernel(%arg0: i32, %arg1: memref<1xi32, #tpu.memory_space<smem>>, %arg2: memref<8x256xf32, #tpu.memory_space<vmem>>, %arg3: memref<8x256xf32, #tpu.memory_space<vmem>>) attributes {dimension_semantics = [#tpu.dimension_semantics<parallel>], iteration_bounds = array<i64: 1>, scalar_prefetch = 0 : i64, scratch_operands = 0 : i64, tpu.core_type = #tpu.core_type<tc>, window_params = [{transform_indices = @transform_0, window_bounds = array<i64: 1>}, {transform_indices = @transform_1, window_bounds = array<i64: 8, 256>}, {transform_indices = @transform_2, window_bounds = array<i64: 8, 256>}]} {
    %c0 = arith.constant 0 : index
    %0 = memref.load %arg1[%c0] : memref<1xi32, #tpu.memory_space<smem>>
    %c-1640531535_i32 = arith.constant -1640531535 : i32
    %1 = arith.muli %0, %c-1640531535_i32 : i32
    %c-2048144777_i32 = arith.constant -2048144777 : i32
    %2 = arith.muli %arg0, %c-2048144777_i32 : i32
    %3 = arith.addi %1, %2 : i32
    %4 = tpu.iota {dimensions = array<i32: 0>} : vector<8x256xi32>
    %5 = tpu.iota {dimensions = array<i32: 1>} : vector<8x256xi32>
    %c8_i32 = arith.constant 8 : i32
    %6 = vector.broadcast %c8_i32 : i32 to vector<8x256xi32>
    %7 = arith.shli %4, %6 : vector<8x256xi32>
    %8 = arith.ori %7, %5 : vector<8x256xi32>
    %9 = vector.broadcast %3 : i32 to vector<8x256xi32>
    %10 = arith.xori %8, %9 : vector<8x256xi32>
    %c13_i32 = arith.constant 13 : i32
    %11 = vector.broadcast %c13_i32 : i32 to vector<8x256xi32>
    %12 = arith.shli %10, %11 : vector<8x256xi32>
    %13 = arith.xori %10, %12 : vector<8x256xi32>
    %c17_i32 = arith.constant 17 : i32
    %14 = vector.broadcast %c17_i32 : i32 to vector<8x256xi32>
    %15 = arith.shrui %13, %14 : vector<8x256xi32>
    %16 = arith.xori %13, %15 : vector<8x256xi32>
    %c-1640531535_i32_0 = arith.constant -1640531535 : i32
    %17 = vector.broadcast %c-1640531535_i32_0 : i32 to vector<8x256xi32>
    %18 = arith.muli %16, %17 : vector<8x256xi32>
    %c16_i32 = arith.constant 16 : i32
    %19 = vector.broadcast %c16_i32 : i32 to vector<8x256xi32>
    %20 = arith.shrui %18, %19 : vector<8x256xi32>
    %21 = arith.xori %18, %20 : vector<8x256xi32>
    %c8_i32_1 = arith.constant 8 : i32
    %22 = vector.broadcast %c8_i32_1 : i32 to vector<8x256xi32>
    %23 = arith.shrui %21, %22 : vector<8x256xi32>
    %c8388608_i32 = arith.constant 8388608 : i32
    %24 = vector.broadcast %c8388608_i32 : i32 to vector<8x256xi32>
    %25 = arith.cmpi sge, %23, %24 : vector<8x256xi32>
    %c0_2 = arith.constant 0 : index
    %c0_3 = arith.constant 0 : index
    %26 = vector.load %arg2[%c0_2, %c0_3] : memref<8x256xf32, #tpu.memory_space<vmem>>, vector<8x256xf32>
    %cst = arith.constant 2.000000e+00 : f32
    %27 = vector.broadcast %cst : f32 to vector<8x256xf32>
    %28 = arith.mulf %26, %27 : vector<8x256xf32>
    %cst_4 = arith.constant 0.000000e+00 : f32
    %29 = vector.broadcast %cst_4 : f32 to vector<8x256xf32>
    %30 = arith.select %25, %28, %29 : vector<8x256xi1>, vector<8x256xf32>
    %c0_5 = arith.constant 0 : index
    %c0_6 = arith.constant 0 : index
    %31 = vector.load %arg3[%c0_5, %c0_6] : memref<8x256xf32, #tpu.memory_space<vmem>>, vector<8x256xf32>
    tpu.vector_store %arg3[%c0_5, %c0_6], %30 {strides = array<i32>} : memref<8x256xf32, #tpu.memory_space<vmem>>, vector<8x256xf32>,
    return
  }
  func.func @transform_0(%arg0: i32) -> i32 {
    %c0_i32 = arith.constant 0 : i32
    %c0_i32_0 = arith.constant 0 : i32
    return %c0_i32 : i32
  }
  func.func @transform_1(%arg0: i32) -> (i32, i32) {
    %c0_i32 = arith.constant 0 : i32
    %c0_i32_0 = arith.constant 0 : i32
    return %arg0, %c0_i32 : i32, i32
  }
  func.func @transform_2(%arg0: i32) -> (i32, i32) {
    %c0_i32 = arith.constant 0 : i32
    %c0_i32_0 = arith.constant 0 : i32
    return %arg0, %c0_i32 : i32, i32
  }
}

</mosaic_0001>

<llo_original>
// kernel: tpu_custom_call.1
$region0: #{tpu_custom_call.1}
  #allocation0 [shape = 'u32[]', space=smem, size = 0x4, offset = 0x4, fixed_abs, tag = 'smem constant byte address 0x4 - core index']
  #allocation1 [shape = 'u32[144,128]{1,0:T(1,128)}', space=vmem, size = 0x12000, scoped, tag = 'internal scratch']
  #allocation2 [shape = 's32[1]{0:T(128)S(6)}', space=smem, size = 0x200, scoped, tag = 'scoped memory for tpu_custom_call.1']
  %s0 = inlined_call_operand.<no memory space> [shape: s32[1], index: 0, kind: input, shape index: {}]
  %s1 = inlined_call_operand.hbm [shape: f32[8,256], index: 1, kind: input, shape index: {}]
  %s2 = inlined_call_operand.hbm [shape: f32[8,256], index: 2, kind: output, shape index: {}]
  %s3 = sld [smem:[#allocation0]]
  $region22: #{tpu_custom_call.1} parent=0
    _
  %s5 = ssub.s32 1, %s3
  %s6 = scalar_select 0, %s5, %s3
  %7 = sst [smem:[#allocation2]] %s0
  $region1: #{tpu_custom_call.1} parent=0
    #allocation3 [shape = 'u8[8192]{0}', space=vmem, size = 0x2000, scoped, tag = 'input window, operand 1, single buffered']
    #allocation4 [shape = 's32[1]{0}', space=sflag, size = 0x4, scoped, tag = 'scoped memory for tpu_custom_call.1']
    #allocation5 [shape = 's32[1]{0}', space=sflag, size = 0x4, scoped, tag = 'scoped memory for tpu_custom_call.1']
    #allocation6 [shape = 'u8[8192]{0}', space=vmem, size = 0x2000, scoped, tag = 'output window, operand 0, single buffered']
    %8 = vsyncpa [#allocation4], 0
    %9 = vsyncpa [#allocation5], 0
    // Predicated region
    $region2: #{tpu_custom_call.1} parent=1 // pred_check
      _
    $region3: #{tpu_custom_call.1} parent=1 // pred_check_branch
      %11 = sbr.rel (0) target = $region5
    $region4: #{tpu_custom_call.1} parent=1 // pred_region
      _
    $region5: #{tpu_custom_call.1} parent=1 // pred_fallthru
      _
    // Predicated region
    $region6: #{tpu_custom_call.1} parent=1 // pred_check
      _
    $region7: #{tpu_custom_call.1} parent=1 // pred_check_branch
      %13 = sbr.rel (0) target = $region9
    $region8: #{tpu_custom_call.1} parent=1 // pred_region
      %s15 = ssub.s32 256, 256
      %16 = vsyncadd [#allocation4], %s15
      %s18 = sshll.u32 [#allocation3], 4
      %s19 = int_to_ptr.vmem [resolvable:$true] %s18
      %21 = dma.hbm_to_vmem [thread:$0]  %s1, 256, %s19, [#allocation4]
    $region9: #{tpu_custom_call.1} parent=1 // pred_fallthru
      _
    // Predicated region
    $region10: #{tpu_custom_call.1} parent=1 // pred_check
      _
    $region11: #{tpu_custom_call.1} parent=1 // pred_check_branch
      %23 = sbr.rel (0) target = $region13
    $region12: #{tpu_custom_call.1} parent=1 // pred_region
      %24 = dma.done [#allocation4], 256
    $region13: #{tpu_custom_call.1} parent=1 // pred_fallthru
      _
    %s25 = sld [smem:[#allocation2]]
    %s26 = smul.u32 %s25, 2654435761
    %s27 = smul.u32 0, 2246822519
    %s28 = sadd.s32 %s26, %s27
    %v29 = vlaneseq
    %v30 = vshrl.u32 %v29, 7
    %v31 = vlaneseq
    %v32 = vand.u32 %v31, 127
    %v33 = vadd.s32 %v32, 128
    %v34 = vshll.u32 %v30, 8
    %v35 = vor.u32 %v34, %v32
    %v36 = vor.u32 %v34, %v33
    %v37 = vstv %s28
    %v38 = vxor.u32 %v35, %v37
    %v39 = vxor.u32 %v36, %v37
    %v40 = vshll.u32 %v38, 13
    %v41 = vshll.u32 %v39, 13
    %v42 = vxor.u32 %v38, %v40
    %v43 = vxor.u32 %v39, %v41
    %v44 = vshrl.u32 %v42, 17
    %v45 = vshrl.u32 %v43, 17
    %v46 = vxor.u32 %v42, %v44
    %v47 = vxor.u32 %v43, %v45
    %v48 = vmul.u32 %v46, 2654435761
    %v49 = vmul.u32 %v47, 2654435761
    %v50 = vshrl.u32 %v48, 16
    %v51 = vshrl.u32 %v49, 16
    %v52 = vxor.u32 %v48, %v50
    %v53 = vxor.u32 %v49, %v51
    %v54 = vshrl.u32 %v52, 8
    %v55 = vshrl.u32 %v53, 8
    %vm56 = vcmp.ge.s32.totalorder %v54, 8388608
    %vm57 = vcmp.ge.s32.totalorder %v55, 8388608
    %v58 = vld [vmem:[#allocation3] sm:$0xff]
    %v59 = vld [vmem:[#allocation3 + $0x8] sm:$0xff]
    %v60 = vmul.f32 %v58, 2.0
    %v61 = vmul.f32 %v59, 2.0
    %v62 = vsel %vm56, %v60, 0.0
    %v63 = vsel %vm57, %v61, 0.0
    %64 = vst [vmem:[#allocation6] sm:$0xff] %v62
    %65 = vst [vmem:[#allocation6 + $0x8] sm:$0xff] %v63
    // Predicated region
    $region14: #{tpu_custom_call.1} parent=1 // pred_check
      _
    $region15: #{tpu_custom_call.1} parent=1 // pred_check_branch
      %67 = sbr.rel (0) target = $region17
    $region16: #{tpu_custom_call.1} parent=1 // pred_region
      %s69 = ssub.s32 256, 256
      %70 = vsyncadd [#allocation5], %s69
      %s72 = sshll.u32 [#allocation6], 4
      %s73 = int_to_ptr.vmem [resolvable:$true] %s72
      %75 = dma.vmem_to_hbm [thread:$0]  %s73, 256, %s2, [#allocation5]
    $region17: #{tpu_custom_call.1} parent=1 // pred_fallthru
      _
    // Predicated region
    $region18: #{tpu_custom_call.1} parent=1 // pred_check
      _
    $region19: #{tpu_custom_call.1} parent=1 // pred_check_branch
      %77 = sbr.rel (0) target = $region21
    $region20: #{tpu_custom_call.1} parent=1 // pred_region
      %78 = dma.done [#allocation5], 256
    $region21: #{tpu_custom_call.1} parent=1 // pred_fallthru
      _
    %79 = vsyncpa [#allocation4], 1
    %80 = vsyncpa [#allocation5], 1

</llo_original>
